<compile_context>
chip_gen: v5e
topology: v5e:2x2
jax: 0.10.0
libtpu: 0.0.40
codegen_flags: <defaults>
</compile_context>

<pallas_src>
import functools

import jax
import jax.numpy as jnp
from jax import lax
from jax.experimental import pallas as pl
from jax.experimental.pallas import tpu as pltpu

EPS = 1e-5


# ----------------------------------------------------------------------------
# In-kernel helpers
# ----------------------------------------------------------------------------
def _conv3x3_taps(xpad_ref, w_ref, b, Wp, Nwp, P):
    """3x3 'same' conv as 9 per-tap MXU matmuls on a flat padded image.

    xpad_ref : (Bt, Cin, Nwp + 4*Wp) bf16 scratch.  Image `b` occupies lanes
               [2*Wp, 2*Wp + Nwp); lanes outside that window and the junk
               columns (lane % Wp in {0, W+1}) inside it are zero.
    w_ref    : (9, P, Cin) bf16 weights, tap-major (tap = dy*3 + dx).

    Returns (P, Nwp) f32 conv output in the same flat layout; junk / tail
    lanes hold finite garbage (callers mask / strip them).
    """
    acc = jnp.zeros((P, Nwp), jnp.float32)
    for dy in range(3):
        for dx in range(3):
            tap = dy * 3 + dx
            start = (dy + 1) * Wp + (dx - 1)          # static lane offset >= 0
            acc = acc + jnp.dot(w_ref[tap],
                                xpad_ref[b, :, start:start + Nwp],
                                preferred_element_type=jnp.float32)
    return acc


# ----------------------------------------------------------------------------
# Kernels
# ----------------------------------------------------------------------------
def conv1_stats_kernel(x_ref, w_ref, mask_ref, y_ref, stat_ref, xpad_ref,
                       *, Wp, Nwp):
    """y1_raw = conv1(x) (pre-BN, bf16 out) + packed BN1 partial statistics."""
    bt, cin, _ = x_ref.shape
    p = y_ref.shape[1]
    mask = mask_ref[...]                               # (1, Nwp) f32
    zero_border = jnp.zeros((cin, 2 * Wp), jnp.bfloat16)
    ssum = jnp.zeros((p, 1), jnp.float32)
    ssq = jnp.zeros((p, 1), jnp.float32)
    for b in range(bt):
        # Zero only the top/bottom border lanes; the interior is overwritten.
        xpad_ref[b, :, :2 * Wp] = zero_border
        xpad_ref[b, :, 2 * Wp + Nwp:] = zero_border
        xpad_ref[b, :, 2 * Wp:2 * Wp + Nwp] = x_ref[b]          # bf16 copy
        y = _conv3x3_taps(xpad_ref, w_ref, b, Wp, Nwp, p)       # (P, Nwp) f32
        ym = y * mask
        ssum = ssum + jnp.sum(ym, axis=1, keepdims=True)
        ssq = ssq + jnp.sum(ym * y, axis=1, keepdims=True)
        y_ref[b] = y.astype(y_ref.dtype)                        # lane-dense bf16
    stat_ref[0, :, 0:1] = ssum
    stat_ref[0, :, 1:2] = ssq


def conv2_stats_kernel(y1_ref, w_ref, scale_ref, shift_ref, mask_ref,
                       y_ref, stat_ref, xpad_ref, *, Wp, Nwp):
    """y2_raw = conv2(relu(bn1(y1_raw))) + packed BN2 partial statistics.

    BN1 is applied as a folded per-channel scale/shift (one FMA); the mask
    zeroes the junk / tail lanes so they act as conv2's zero padding.
    """
    bt = y1_ref.shape[0]
    p = y_ref.shape[1]
    mask = mask_ref[...]
    scale = scale_ref[...]                             # (P, 1) f32
    shift = shift_ref[...]
    zero_border = jnp.zeros((p, 2 * Wp), jnp.bfloat16)
    ssum = jnp.zeros((p, 1), jnp.float32)
    ssq = jnp.zeros((p, 1), jnp.float32)
    for b in range(bt):
        a = jnp.maximum(y1_ref[b].astype(jnp.float32) * scale + shift, 0.0)
        a = a * mask                                   # junk/tail lanes -> 0
        xpad_ref[b, :, :2 * Wp] = zero_border
        xpad_ref[b, :, 2 * Wp + Nwp:] = zero_border
        xpad_ref[b, :, 2 * Wp:2 * Wp + Nwp] = a.astype(jnp.bfloat16)
        y = _conv3x3_taps(xpad_ref, w_ref, b, Wp, Nwp, p)
        ym = y * mask
        ssum = ssum + jnp.sum(ym, axis=1, keepdims=True)
        ssq = ssq + jnp.sum(ym * y, axis=1, keepdims=True)
        y_ref[b] = y.astype(y_ref.dtype)
    stat_ref[0, :, 0:1] = ssum
    stat_ref[0, :, 1:2] = ssq


def bn2_add_relu_kernel(y2_ref, res_ref, scale_ref, shift_ref, o_ref):
    """out = relu(bn2(y2_raw) + residual); all lane-dense, no relayouts."""
    scale = scale_ref[...]
    shift = shift_ref[...]
    for b in range(y2_ref.shape[0]):
        y = y2_ref[b].astype(jnp.float32) * scale + shift
        o_ref[b] = jnp.maximum(y + res_ref[b], 0.0)


# ----------------------------------------------------------------------------
# Host-side glue
# ----------------------------------------------------------------------------
def _fold_bn(stats, gamma, beta, count):
    """Fold training-mode BN (biased batch var) into per-channel scale/shift."""
    s = jnp.sum(stats[:, :, 0], axis=0)                # (P,)
    q = jnp.sum(stats[:, :, 1], axis=0)
    mean = s / count
    var = q / count - mean * mean
    scale = gamma * lax.rsqrt(var + EPS)
    shift = beta - mean * scale
    return scale.reshape(-1, 1), shift.reshape(-1, 1)


def _pick_bt(batch):
    """Images per grid step; keep >= 2 grid steps so both v7x TCs get work."""
    for cand in (4, 2):
        if batch % cand == 0 and batch // cand >= 2:
            return cand
    return 1


def _vmem_limit_bytes():
    try:
        cap = int(pltpu.get_tpu_info().vmem_capacity_bytes)
    except Exception:
        cap = 64 * 1024 * 1024                         # conservative (v7x)
    return int(min(cap - cap // 8, 100 * 1024 * 1024))


def basic_block_forward(x_nchw, w1, g1, b1, w2, g2, b2, *, bt=None):
    """BasicBlock forward (stride=1, downsample=None). Input/output are NCHW."""
    B, C, H, W = x_nchw.shape
    P = w1.shape[0]
    assert w1.shape == (P, C, 3, 3) and w2.shape == (P, P, 3, 3)
    assert C == P, "identity residual requires inplanes == planes"

    Wp = W + 2
    Nw = H * Wp
    Nwp = ((Nw + 127) // 128) * 128                    # lane-dense (128-mult)
    buf_w = Nwp + 4 * Wp                               # padded-image scratch
    n_valid = B * H * W
    if bt is None:
        bt = _pick_bt(B)
    G = B // bt

    # Pre-pad x ONCE into the flat junk-column layout (zero left/right pad
    # columns + zero tail lanes); both the conv1 input and the residual use it.
    xw = jnp.pad(x_nchw.astype(jnp.float32), ((0, 0), (0, 0), (0, 0), (1, 1)))
    x_flat = xw.reshape(B, C, Nw)
    if Nwp > Nw:
        x_flat = jnp.pad(x_flat, ((0, 0), (0, 0), (0, Nwp - Nw)))
    x_bf = x_flat.astype(jnp.bfloat16)

    # Tap-major (tap, out, in) weight tensors, bf16 for the MXU fast path.
    wt1 = jnp.transpose(w1, (2, 3, 0, 1)).reshape(9, P, C).astype(jnp.bfloat16)
    wt2 = jnp.transpose(w2, (2, 3, 0, 1)).reshape(9, P, P).astype(jnp.bfloat16)

    # Valid-lane mask for the flat layout (drops junk columns and the tail).
    lane = jnp.arange(Nwp, dtype=jnp.int32)
    col = lane % Wp
    valid = (col >= 1) & (col <= W) & (lane < Nw)
    mask = valid.astype(jnp.float32).reshape(1, Nwp)

    cparams = pltpu.CompilerParams(
        dimension_semantics=("parallel",),             # shard batch across TCs
        vmem_limit_bytes=_vmem_limit_bytes())

    idx_b = lambda i: (i, 0, 0)
    fix2 = lambda i: (0, 0)
    fix3 = lambda i: (0, 0, 0)

    # ---- pass 1: conv1 (9 bf16 tap matmuls) + BN1 partial stats ------------
    y1, st1 = pl.pallas_call(
        functools.partial(conv1_stats_kernel, Wp=Wp, Nwp=Nwp),
        grid=(G,),
        in_specs=[pl.BlockSpec((bt, C, Nwp), idx_b),
                  pl.BlockSpec((9, P, C), fix3),
                  pl.BlockSpec((1, Nwp), fix2)],
        out_specs=[pl.BlockSpec((bt, P, Nwp), idx_b),
                   pl.BlockSpec((1, P, 2), idx_b)],
        out_shape=[jax.ShapeDtypeStruct((B, P, Nwp), jnp.bfloat16),
                   jax.ShapeDtypeStruct((G, P, 2), jnp.float32)],
        scratch_shapes=[pltpu.VMEM((bt, C, buf_w), jnp.bfloat16)],
        compiler_params=cparams,
    )(x_bf, wt1, mask)
    scale1, shift1 = _fold_bn(st1, g1, b1, n_valid)

    # ---- pass 2: fused bn1+relu, conv2 + BN2 partial stats ------------------
    y2, st2 = pl.pallas_call(
        functools.partial(conv2_stats_kernel, Wp=Wp, Nwp=Nwp),
        grid=(G,),
        in_specs=[pl.BlockSpec((bt, P, Nwp), idx_b),
                  pl.BlockSpec((9, P, P), fix3),
                  pl.BlockSpec((P, 1), fix2),
                  pl.BlockSpec((P, 1), fix2),
                  pl.BlockSpec((1, Nwp), fix2)],
        out_specs=[pl.BlockSpec((bt, P, Nwp), idx_b),
                   pl.BlockSpec((1, P, 2), idx_b)],
        out_shape=[jax.ShapeDtypeStruct((B, P, Nwp), jnp.bfloat16),
                   jax.ShapeDtypeStruct((G, P, 2), jnp.float32)],
        scratch_shapes=[pltpu.VMEM((bt, P, buf_w), jnp.bfloat16)],
        compiler_params=cparams,
    )(y1, wt2, scale1, shift1, mask)
    scale2, shift2 = _fold_bn(st2, g2, b2, n_valid)

    # ---- pass 3: fused bn2 + residual add + relu (lane-dense in/out) --------
    out_flat = pl.pallas_call(
        bn2_add_relu_kernel,
        grid=(G,),
        in_specs=[pl.BlockSpec((bt, P, Nwp), idx_b),
                  pl.BlockSpec((bt, C, Nwp), idx_b),
                  pl.BlockSpec((P, 1), fix2),
                  pl.BlockSpec((P, 1), fix2)],
        out_specs=pl.BlockSpec((bt, P, Nwp), idx_b),
        out_shape=jax.ShapeDtypeStruct((B, P, Nwp), jnp.float32),
        compiler_params=cparams,
    )(y2, x_flat, scale2, shift2)

    # Strip tail + junk columns with one XLA slice (outside the kernels).
    out = out_flat[:, :, :Nw].reshape(B, P, H, Wp)[:, :, :, 1:W + 1]
    return out


# ----------------------------------------------------------------------------
# Pure-JAX reference (matches the PyTorch module, training-mode BN, f32)
# ----------------------------------------------------------------------------
def reference_basic_block(x, w1, g1, b1, w2, g2, b2):
    def conv(x, w):
        return lax.conv_general_dilated(
            x, w, window_strides=(1, 1), padding=((1, 1), (1, 1)),
            dimension_numbers=('NCHW', 'OIHW', 'NCHW'),
            precision=lax.Precision.HIGHEST)

    def bn(y, g, b):
        mean = jnp.mean(y, axis=(0, 2, 3), keepdims=True)
        var = jnp.mean((y - mean) ** 2, axis=(0, 2, 3), keepdims=True)
        return (g.reshape(1, -1, 1, 1) * (y - mean) * lax.rsqrt(var + EPS)
                + b.reshape(1, -1, 1, 1))

    out = jax.nn.relu(bn(conv(x, w1), g1, b1))
    out = bn(conv(out, w2), g2, b2)
    return jax.nn.relu(out + x)


if __name__ == "__main__":
    key = jax.random.PRNGKey(0)
    B, C, H, W = 2, 8, 16, 16       # inplanes == planes == 8 (identity residual)
    P = C
    ks = jax.random.split(key, 7)
    x = jax.random.normal(ks[0], (B, C, H, W), jnp.float32)
    w1 = 0.1 * jax.random.normal(ks[1], (P, C, 3, 3), jnp.float32)
    w2 = 0.1 * jax.random.normal(ks[2], (P, P, 3, 3), jnp.float32)
    g1 = 1.0 + 0.1 * jax.random.normal(ks[3], (P,), jnp.float32)
    b1 = 0.1 * jax.random.normal(ks[4], (P,), jnp.float32)
    g2 = 1.0 + 0.1 * jax.random.normal(ks[5], (P,), jnp.float32)
    b2 = 0.1 * jax.random.normal(ks[6], (P,), jnp.float32)

    out = basic_block_forward(x, w1, g1, b1, w2, g2, b2)
    out = jax.block_until_ready(out)

    ref = reference_basic_block(x, w1, g1, b1, w2, g2, b2)
    assert out.shape == (B, P, H, W), out.shape
    # bf16 MXU operands + bf16 inter-pass activations (f32 accumulation /
    # stats) -> compare against the f32 reference with a bf16 tolerance.
    max_err = float(jnp.max(jnp.abs(out - ref)))
    assert jnp.allclose(out, ref, rtol=4e-2, atol=4e-2), f"max_err={max_err}"
    print("KERNEL_OK")
</pallas_src>

<mosaic_0001>
module attributes {stable_mosaic.version = 11 : i64} {
  func.func @conv1_stats_kernel(%arg0: i32, %arg1: memref<1x8x384xbf16, #tpu.memory_space<vmem>>, %arg2: memref<9x8x8xbf16, #tpu.memory_space<vmem>>, %arg3: memref<1x384xf32, #tpu.memory_space<vmem>>, %arg4: memref<1x8x384xbf16, #tpu.memory_space<vmem>>, %arg5: memref<1x8x2xf32, #tpu.memory_space<vmem>>, %arg6: memref<1x8x456xbf16, #tpu.memory_space<vmem>>) attributes {dimension_semantics = [#tpu.dimension_semantics<parallel>], iteration_bounds = array<i64: 2>, scalar_prefetch = 0 : i64, scratch_operands = 1 : i64, tpu.core_type = #tpu.core_type<tc>, window_params = [{transform_indices = @transform_0, window_bounds = array<i64: 1, 8, 384>}, {pipeline_mode = #tpu.pipeline_mode<synchronous>, transform_indices = @transform_1, window_bounds = array<i64: 9, 8, 8>}, {pipeline_mode = #tpu.pipeline_mode<synchronous>, transform_indices = @transform_2, window_bounds = array<i64: 1, 384>}, {transform_indices = @transform_3, window_bounds = array<i64: 1, 8, 384>}, {transform_indices = @transform_4, window_bounds = array<i64: 1, 8, 2>}]} {
    %c0 = arith.constant 0 : index
    %c0_0 = arith.constant 0 : index
    %0 = vector.load %arg3[%c0, %c0_0] : memref<1x384xf32, #tpu.memory_space<vmem>>, vector<1x384xf32>
    %cst = arith.constant 0.000000e+00 : bf16
    %1 = vector.broadcast %cst : bf16 to vector<8x36xbf16>
    %cst_1 = arith.constant 0.000000e+00 : f32
    %2 = vector.broadcast %cst_1 : f32 to vector<8x1xf32>
    %cst_2 = arith.constant 0.000000e+00 : f32
    %3 = vector.broadcast %cst_2 : f32 to vector<8x1xf32>
    %c0_3 = arith.constant 0 : index
    %c0_4 = arith.constant 0 : index
    %c0_5 = arith.constant 0 : index
    %4 = vector.load %arg6[%c0_3, %c0_4, %c0_5] : memref<1x8x456xbf16, #tpu.memory_space<vmem>>, vector<1x8x36xbf16>
    %5 = vector.shape_cast %4 : vector<1x8x36xbf16> to vector<8x36xbf16>
    %6 = vector.shape_cast %1 : vector<8x36xbf16> to vector<1x8x36xbf16>
    tpu.vector_store %arg6[%c0_3, %c0_4, %c0_5], %6 {strides = array<i32>} : memref<1x8x456xbf16, #tpu.memory_space<vmem>>, vector<1x8x36xbf16>,
    %c0_6 = arith.constant 0 : index
    %c0_7 = arith.constant 0 : index
    %c420 = arith.constant 420 : index
    %7 = vector.load %arg6[%c0_6, %c0_7, %c420] : memref<1x8x456xbf16, #tpu.memory_space<vmem>>, vector<1x8x36xbf16>
    %8 = vector.shape_cast %7 : vector<1x8x36xbf16> to vector<8x36xbf16>
    %9 = vector.shape_cast %1 : vector<8x36xbf16> to vector<1x8x36xbf16>
    tpu.vector_store %arg6[%c0_6, %c0_7, %c420], %9 {strides = array<i32>} : memref<1x8x456xbf16, #tpu.memory_space<vmem>>, vector<1x8x36xbf16>,
    %c0_8 = arith.constant 0 : index
    %c0_9 = arith.constant 0 : index
    %c0_10 = arith.constant 0 : index
    %10 = vector.load %arg1[%c0_8, %c0_9, %c0_10] : memref<1x8x384xbf16, #tpu.memory_space<vmem>>, vector<1x8x384xbf16>
    %11 = vector.shape_cast %10 : vector<1x8x384xbf16> to vector<8x384xbf16>
    %c0_11 = arith.constant 0 : index
    %c0_12 = arith.constant 0 : index
    %c36 = arith.constant 36 : index
    %12 = vector.load %arg6[%c0_11, %c0_12, %c36] : memref<1x8x456xbf16, #tpu.memory_space<vmem>>, vector<1x8x384xbf16>
    %13 = vector.shape_cast %12 : vector<1x8x384xbf16> to vector<8x384xbf16>
    %14 = vector.shape_cast %11 : vector<8x384xbf16> to vector<1x8x384xbf16>
    tpu.vector_store %arg6[%c0_11, %c0_12, %c36], %14 {strides = array<i32>} : memref<1x8x456xbf16, #tpu.memory_space<vmem>>, vector<1x8x384xbf16>,
    %cst_13 = arith.constant 0.000000e+00 : f32
    %15 = vector.broadcast %cst_13 : f32 to vector<8x384xf32>
    %c0_14 = arith.constant 0 : index
    %c0_15 = arith.constant 0 : index
    %c0_16 = arith.constant 0 : index
    %16 = vector.load %arg2[%c0_14, %c0_15, %c0_16] : memref<9x8x8xbf16, #tpu.memory_space<vmem>>, vector<1x8x8xbf16>
    %17 = vector.shape_cast %16 : vector<1x8x8xbf16> to vector<8x8xbf16>
    %c0_17 = arith.constant 0 : index
    %c0_18 = arith.constant 0 : index
    %c17 = arith.constant 17 : index
    %18 = vector.load %arg6[%c0_17, %c0_18, %c17] : memref<1x8x456xbf16, #tpu.memory_space<vmem>>, vector<1x8x384xbf16>
    %19 = vector.shape_cast %18 : vector<1x8x384xbf16> to vector<8x384xbf16>
    %cst_19 = arith.constant dense<0.000000e+00> : vector<8x384xf32>
    %20 = tpu.matmul %17, %19, %cst_19 {dimension_numbers = #tpu.dot_dimension_numbers<[1], [0], [0], [1], [0, 0, 1, 1], [], []>} : vector<8x8xbf16>, vector<8x384xbf16>, vector<8x384xf32> -> vector<8x384xf32>
    %21 = arith.addf %15, %20 : vector<8x384xf32>
    %c1 = arith.constant 1 : index
    %c0_20 = arith.constant 0 : index
    %c0_21 = arith.constant 0 : index
    %22 = vector.load %arg2[%c1, %c0_20, %c0_21] : memref<9x8x8xbf16, #tpu.memory_space<vmem>>, vector<1x8x8xbf16>
    %23 = vector.shape_cast %22 : vector<1x8x8xbf16> to vector<8x8xbf16>
    %c0_22 = arith.constant 0 : index
    %c0_23 = arith.constant 0 : index
    %c18 = arith.constant 18 : index
    %24 = vector.load %arg6[%c0_22, %c0_23, %c18] : memref<1x8x456xbf16, #tpu.memory_space<vmem>>, vector<1x8x384xbf16>
    %25 = vector.shape_cast %24 : vector<1x8x384xbf16> to vector<8x384xbf16>
    %cst_24 = arith.constant dense<0.000000e+00> : vector<8x384xf32>
    %26 = tpu.matmul %23, %25, %cst_24 {dimension_numbers = #tpu.dot_dimension_numbers<[1], [0], [0], [1], [0, 0, 1, 1], [], []>} : vector<8x8xbf16>, vector<8x384xbf16>, vector<8x384xf32> -> vector<8x384xf32>
    %27 = arith.addf %21, %26 : vector<8x384xf32>
    %c2 = arith.constant 2 : index
    %c0_25 = arith.constant 0 : index
    %c0_26 = arith.constant 0 : index
    %28 = vector.load %arg2[%c2, %c0_25, %c0_26] : memref<9x8x8xbf16, #tpu.memory_space<vmem>>, vector<1x8x8xbf16>
    %29 = vector.shape_cast %28 : vector<1x8x8xbf16> to vector<8x8xbf16>
    %c0_27 = arith.constant 0 : index
    %c0_28 = arith.constant 0 : index
    %c19 = arith.constant 19 : index
    %30 = vector.load %arg6[%c0_27, %c0_28, %c19] : memref<1x8x456xbf16, #tpu.memory_space<vmem>>, vector<1x8x384xbf16>
    %31 = vector.shape_cast %30 : vector<1x8x384xbf16> to vector<8x384xbf16>
    %cst_29 = arith.constant dense<0.000000e+00> : vector<8x384xf32>
    %32 = tpu.matmul %29, %31, %cst_29 {dimension_numbers = #tpu.dot_dimension_numbers<[1], [0], [0], [1], [0, 0, 1, 1], [], []>} : vector<8x8xbf16>, vector<8x384xbf16>, vector<8x384xf32> -> vector<8x384xf32>
    %33 = arith.addf %27, %32 : vector<8x384xf32>
    %c3 = arith.constant 3 : index
    %c0_30 = arith.constant 0 : index
    %c0_31 = arith.constant 0 : index
    %34 = vector.load %arg2[%c3, %c0_30, %c0_31] : memref<9x8x8xbf16, #tpu.memory_space<vmem>>, vector<1x8x8xbf16>
    %35 = vector.shape_cast %34 : vector<1x8x8xbf16> to vector<8x8xbf16>
    %c0_32 = arith.constant 0 : index
    %c0_33 = arith.constant 0 : index
    %c35 = arith.constant 35 : index
    %36 = vector.load %arg6[%c0_32, %c0_33, %c35] : memref<1x8x456xbf16, #tpu.memory_space<vmem>>, vector<1x8x384xbf16>
    %37 = vector.shape_cast %36 : vector<1x8x384xbf16> to vector<8x384xbf16>
    %cst_34 = arith.constant dense<0.000000e+00> : vector<8x384xf32>
    %38 = tpu.matmul %35, %37, %cst_34 {dimension_numbers = #tpu.dot_dimension_numbers<[1], [0], [0], [1], [0, 0, 1, 1], [], []>} : vector<8x8xbf16>, vector<8x384xbf16>, vector<8x384xf32> -> vector<8x384xf32>
    %39 = arith.addf %33, %38 : vector<8x384xf32>
    %c4 = arith.constant 4 : index
    %c0_35 = arith.constant 0 : index
    %c0_36 = arith.constant 0 : index
    %40 = vector.load %arg2[%c4, %c0_35, %c0_36] : memref<9x8x8xbf16, #tpu.memory_space<vmem>>, vector<1x8x8xbf16>
    %41 = vector.shape_cast %40 : vector<1x8x8xbf16> to vector<8x8xbf16>
    %c0_37 = arith.constant 0 : index
    %c0_38 = arith.constant 0 : index
    %c36_39 = arith.constant 36 : index
    %42 = vector.load %arg6[%c0_37, %c0_38, %c36_39] : memref<1x8x456xbf16, #tpu.memory_space<vmem>>, vector<1x8x384xbf16>
    %43 = vector.shape_cast %42 : vector<1x8x384xbf16> to vector<8x384xbf16>
    %cst_40 = arith.constant dense<0.000000e+00> : vector<8x384xf32>
    %44 = tpu.matmul %41, %43, %cst_40 {dimension_numbers = #tpu.dot_dimension_numbers<[1], [0], [0], [1], [0, 0, 1, 1], [], []>} : vector<8x8xbf16>, vector<8x384xbf16>, vector<8x384xf32> -> vector<8x384xf32>
    %45 = arith.addf %39, %44 : vector<8x384xf32>
    %c5 = arith.constant 5 : index
    %c0_41 = arith.constant 0 : index
    %c0_42 = arith.constant 0 : index
    %46 = vector.load %arg2[%c5, %c0_41, %c0_42] : memref<9x8x8xbf16, #tpu.memory_space<vmem>>, vector<1x8x8xbf16>
    %47 = vector.shape_cast %46 : vector<1x8x8xbf16> to vector<8x8xbf16>
    %c0_43 = arith.constant 0 : index
    %c0_44 = arith.constant 0 : index
    %c37 = arith.constant 37 : index
    %48 = vector.load %arg6[%c0_43, %c0_44, %c37] : memref<1x8x456xbf16, #tpu.memory_space<vmem>>, vector<1x8x384xbf16>
    %49 = vector.shape_cast %48 : vector<1x8x384xbf16> to vector<8x384xbf16>
    %cst_45 = arith.constant dense<0.000000e+00> : vector<8x384xf32>
    %50 = tpu.matmul %47, %49, %cst_45 {dimension_numbers = #tpu.dot_dimension_numbers<[1], [0], [0], [1], [0, 0, 1, 1], [], []>} : vector<8x8xbf16>, vector<8x384xbf16>, vector<8x384xf32> -> vector<8x384xf32>
    %51 = arith.addf %45, %50 : vector<8x384xf32>
    %c6 = arith.constant 6 : index
    %c0_46 = arith.constant 0 : index
    %c0_47 = arith.constant 0 : index
    %52 = vector.load %arg2[%c6, %c0_46, %c0_47] : memref<9x8x8xbf16, #tpu.memory_space<vmem>>, vector<1x8x8xbf16>
    %53 = vector.shape_cast %52 : vector<1x8x8xbf16> to vector<8x8xbf16>
    %c0_48 = arith.constant 0 : index
    %c0_49 = arith.constant 0 : index
    %c53 = arith.constant 53 : index
    %54 = vector.load %arg6[%c0_48, %c0_49, %c53] : memref<1x8x456xbf16, #tpu.memory_space<vmem>>, vector<1x8x384xbf16>
    %55 = vector.shape_cast %54 : vector<1x8x384xbf16> to vector<8x384xbf16>
    %cst_50 = arith.constant dense<0.000000e+00> : vector<8x384xf32>
    %56 = tpu.matmul %53, %55, %cst_50 {dimension_numbers = #tpu.dot_dimension_numbers<[1], [0], [0], [1], [0, 0, 1, 1], [], []>} : vector<8x8xbf16>, vector<8x384xbf16>, vector<8x384xf32> -> vector<8x384xf32>
    %57 = arith.addf %51, %56 : vector<8x384xf32>
    %c7 = arith.constant 7 : index
    %c0_51 = arith.constant 0 : index
    %c0_52 = arith.constant 0 : index
    %58 = vector.load %arg2[%c7, %c0_51, %c0_52] : memref<9x8x8xbf16, #tpu.memory_space<vmem>>, vector<1x8x8xbf16>
    %59 = vector.shape_cast %58 : vector<1x8x8xbf16> to vector<8x8xbf16>
    %c0_53 = arith.constant 0 : index
    %c0_54 = arith.constant 0 : index
    %c54 = arith.constant 54 : index
    %60 = vector.load %arg6[%c0_53, %c0_54, %c54] : memref<1x8x456xbf16, #tpu.memory_space<vmem>>, vector<1x8x384xbf16>
    %61 = vector.shape_cast %60 : vector<1x8x384xbf16> to vector<8x384xbf16>
    %cst_55 = arith.constant dense<0.000000e+00> : vector<8x384xf32>
    %62 = tpu.matmul %59, %61, %cst_55 {dimension_numbers = #tpu.dot_dimension_numbers<[1], [0], [0], [1], [0, 0, 1, 1], [], []>} : vector<8x8xbf16>, vector<8x384xbf16>, vector<8x384xf32> -> vector<8x384xf32>
    %63 = arith.addf %57, %62 : vector<8x384xf32>
    %c8 = arith.constant 8 : index
    %c0_56 = arith.constant 0 : index
    %c0_57 = arith.constant 0 : index
    %64 = vector.load %arg2[%c8, %c0_56, %c0_57] : memref<9x8x8xbf16, #tpu.memory_space<vmem>>, vector<1x8x8xbf16>
    %65 = vector.shape_cast %64 : vector<1x8x8xbf16> to vector<8x8xbf16>
    %c0_58 = arith.constant 0 : index
    %c0_59 = arith.constant 0 : index
    %c55 = arith.constant 55 : index
    %66 = vector.load %arg6[%c0_58, %c0_59, %c55] : memref<1x8x456xbf16, #tpu.memory_space<vmem>>, vector<1x8x384xbf16>
    %67 = vector.shape_cast %66 : vector<1x8x384xbf16> to vector<8x384xbf16>
    %cst_60 = arith.constant dense<0.000000e+00> : vector<8x384xf32>
    %68 = tpu.matmul %65, %67, %cst_60 {dimension_numbers = #tpu.dot_dimension_numbers<[1], [0], [0], [1], [0, 0, 1, 1], [], []>} : vector<8x8xbf16>, vector<8x384xbf16>, vector<8x384xf32> -> vector<8x384xf32>
    %69 = arith.addf %63, %68 : vector<8x384xf32>
    %70 = vector.broadcast %0 : vector<1x384xf32> to vector<8x384xf32>
    %71 = arith.mulf %69, %70 : vector<8x384xf32>
    %cst_61 = arith.constant dense<0.000000e+00> : vector<8xf32>
    %72 = vector.multi_reduction <add>, %71, %cst_61 [1] : vector<8x384xf32> to vector<8xf32>
    %73 = vector.shape_cast %72 : vector<8xf32> to vector<8x1xf32>
    %74 = arith.addf %2, %73 : vector<8x1xf32>
    %75 = arith.mulf %71, %69 : vector<8x384xf32>
    %cst_62 = arith.constant dense<0.000000e+00> : vector<8xf32>
    %76 = vector.multi_reduction <add>, %75, %cst_62 [1] : vector<8x384xf32> to vector<8xf32>
    %77 = vector.shape_cast %76 : vector<8xf32> to vector<8x1xf32>
    %78 = arith.addf %3, %77 : vector<8x1xf32>
    %79 = arith.truncf %69 : vector<8x384xf32> to vector<8x384xbf16>
    %c0_63 = arith.constant 0 : index
    %c0_64 = arith.constant 0 : index
    %c0_65 = arith.constant 0 : index
    %80 = vector.load %arg4[%c0_63, %c0_64, %c0_65] : memref<1x8x384xbf16, #tpu.memory_space<vmem>>, vector<1x8x384xbf16>
    %81 = vector.shape_cast %80 : vector<1x8x384xbf16> to vector<8x384xbf16>
    %82 = vector.shape_cast %79 : vector<8x384xbf16> to vector<1x8x384xbf16>
    tpu.vector_store %arg4[%c0_63, %c0_64, %c0_65], %82 {strides = array<i32>} : memref<1x8x384xbf16, #tpu.memory_space<vmem>>, vector<1x8x384xbf16>,
    %c0_66 = arith.constant 0 : index
    %c0_67 = arith.constant 0 : index
    %c0_68 = arith.constant 0 : index
    %83 = vector.load %arg5[%c0_66, %c0_67, %c0_68] : memref<1x8x2xf32, #tpu.memory_space<vmem>>, vector<1x8x1xf32>
    %84 = vector.shape_cast %83 : vector<1x8x1xf32> to vector<8x1xf32>
    %85 = vector.shape_cast %74 : vector<8x1xf32> to vector<1x8x1xf32>
    tpu.vector_store %arg5[%c0_66, %c0_67, %c0_68], %85 {strides = array<i32>} : memref<1x8x2xf32, #tpu.memory_space<vmem>>, vector<1x8x1xf32>,
    %c0_69 = arith.constant 0 : index
    %c0_70 = arith.constant 0 : index
    %c1_71 = arith.constant 1 : index
    %86 = vector.load %arg5[%c0_69, %c0_70, %c1_71] : memref<1x8x2xf32, #tpu.memory_space<vmem>>, vector<1x8x1xf32>
    %87 = vector.shape_cast %86 : vector<1x8x1xf32> to vector<8x1xf32>
    %88 = vector.shape_cast %78 : vector<8x1xf32> to vector<1x8x1xf32>
    tpu.vector_store %arg5[%c0_69, %c0_70, %c1_71], %88 {strides = array<i32>} : memref<1x8x2xf32, #tpu.memory_space<vmem>>, vector<1x8x1xf32>,
    return
  }
  func.func @transform_0(%arg0: i32) -> (i32, i32, i32) {
    %c0_i32 = arith.constant 0 : i32
    %c0_i32_0 = arith.constant 0 : i32
    %c0_i32_1 = arith.constant 0 : i32
    return %arg0, %c0_i32, %c0_i32_0 : i32, i32, i32
  }
  func.func @transform_1(%arg0: i32) -> (i32, i32, i32) {
    %c0_i32 = arith.constant 0 : i32
    %c0_i32_0 = arith.constant 0 : i32
    %c0_i32_1 = arith.constant 0 : i32
    %c0_i32_2 = arith.constant 0 : i32
    return %c0_i32, %c0_i32_0, %c0_i32_1 : i32, i32, i32
  }
  func.func @transform_2(%arg0: i32) -> (i32, i32) {
    %c0_i32 = arith.constant 0 : i32
    %c0_i32_0 = arith.constant 0 : i32
    %c0_i32_1 = arith.constant 0 : i32
    return %c0_i32, %c0_i32_0 : i32, i32
  }
  func.func @transform_3(%arg0: i32) -> (i32, i32, i32) {
    %c0_i32 = arith.constant 0 : i32
    %c0_i32_0 = arith.constant 0 : i32
    %c0_i32_1 = arith.constant 0 : i32
    return %arg0, %c0_i32, %c0_i32_0 : i32, i32, i32
  }
  func.func @transform_4(%arg0: i32) -> (i32, i32, i32) {
    %c0_i32 = arith.constant 0 : i32
    %c0_i32_0 = arith.constant 0 : i32
    %c0_i32_1 = arith.constant 0 : i32
    return %arg0, %c0_i32, %c0_i32_0 : i32, i32, i32
  }
}

</mosaic_0001>

<llo_original>
// kernel: tpu_custom_call.1
$region0: #{tpu_custom_call.1}
  #allocation0 [shape = 'u32[]', space=smem, size = 0x4, offset = 0x4, fixed_abs, tag = 'smem constant byte address 0x4 - core index']
  #allocation1 [shape = 'u32[72,128]{1,0:T(1,128)}', space=vmem, size = 0x9000, scoped, tag = 'internal scratch']
  #allocation2 [shape = 'bf16[1,8,456]{2,1,0:T(8,128)(2,1)}', space=vmem, size = 0x2000, scoped, tag = 'scratch operand']
  %s0 = inlined_call_operand.vmem [shape: bf16[2,8,384], index: 0, kind: input, shape index: {}]
  %s1 = inlined_call_operand.vmem [shape: bf16[9,8,8], index: 1, kind: input, shape index: {}]
  %s2 = inlined_call_operand.vmem [shape: f32[1,384], index: 2, kind: input, shape index: {}]
  %s3 = inlined_call_operand.hbm [shape: bf16[2,8,384], index: 3, kind: output, shape index: {0}]
  %s4 = inlined_call_operand.vmem [shape: f32[2,8,2], index: 4, kind: output, shape index: {1}]
  %5 = xla_tuple %s3, %s4
  %s6 = sld [smem:[#allocation0]]
  $region53: #{tpu_custom_call.1} parent=0
    _
  %s8 = ssub.s32 1, %s6
  %s9 = scalar_select 0, %s8, %s6
  $region1: #{tpu_custom_call.1} parent=0
    #allocation3 [shape = 'u8[12288]{0}', space=vmem, size = 0x3000, scoped, tag = 'output window, operand 0']
    #allocation4 [shape = 's32[2]{0}', space=sflag, size = 0x8, scoped, tag = 'scoped memory for tpu_custom_call.1']
    %10 = vsyncpa [#allocation4], 0
    %s11 = scalar_lea.sflag [#allocation4], 1
    %12 = vsyncpa %s11, 0
    loop: start=0, step=1, limit=4
    $region2: #{tpu_custom_call.1} parent=1 // loop_pre_header
      _
    $region3: #{tpu_custom_call.1} parent=1 // loop_header
      %s14 = sphi 0, %s18
      %p15 = scmp.ge.s32.totalorder %s14, 4
      %s24 = sphi 0, %s26
      %s27 = sphi 0, %s24
      %s28 = sphi 0, %s27
      %s44 = sphi 0, %s28
      %s48 = sphi 0, %s48
      %s50 = sphi 0, %s48
      %s51 = sphi 0, %s50
      %s65 = sphi 0, %s51
      %s69 = sphi 0, %s69
      %s71 = sphi 0, %s69
      %s72 = sphi 0, %s71
      %s86 = sphi 0, %s72
      %s92 = sphi 0, %s94
      %s95 = sphi 0, %s92
      %s96 = sphi 0, %s95
      %s112 = sphi 0, %s96
      %s118 = sphi 0, %s120
      %s121 = sphi 0, %s118
      %s122 = sphi 0, %s121
      %s138 = sphi 0, %s122
    $region4: #{tpu_custom_call.1} parent=1 // loop_header_branch
      %17 = sbr.rel (%p15) target = $region8
    $region5: #{tpu_custom_call.1} parent=1 // loop_body
      %s19 = ssub.s32 %s14, 1
      %s20 = ssub.s32 %s14, 2
      %s21 = sadd.s32 %s14, 1
      %s22 = ssub.s32 %s14, %s21
      %p23 = scmp.eq.s32.totalorder %s22, 0
      %s25 = sadd.s32 %s24, 1
      %s26 = scalar_select %p23, %s24, %s25
      %p29 = pneg %p23
      %p30 = scmp.eq.s32.totalorder %s14, 1
      %p31 = por %p29, %p30
      %p32 = scmp.ne.s32.totalorder %s24, %s27
      %p33 = scmp.eq.s32.totalorder %s14, 0
      %p34 = por %p32, %p33
      %p35 = scmp.ne.s32.totalorder %s24, %s27
      %p36 = scmp.eq.s32.totalorder %s19, 1
      %p37 = por %p35, %p36
      %p38 = scmp.ne.s32.totalorder %s27, %s28
      %p39 = scmp.eq.s32.totalorder %s19, 0
      %p40 = por %p38, %p39
      %p41 = scmp.ne.s32.totalorder %s27, %s28
      %p42 = scmp.eq.s32.totalorder %s20, 1
      %p43 = por %p41, %p42
      %p45 = scmp.ne.s32.totalorder %s28, %s44
      %p46 = scmp.eq.s32.totalorder %s20, 0
      %p47 = por %p45, %p46
      %s49 = sadd.s32 %s48, 1
      %p52 = scmp.eq.s32.totalorder %s14, 1
      %p53 = scmp.ne.s32.totalorder %s48, %s50
      %p54 = scmp.eq.s32.totalorder %s14, 0
      %p55 = por %p53, %p54
      %p56 = scmp.ne.s32.totalorder %s48, %s50
      %p57 = scmp.eq.s32.totalorder %s19, 1
      %p58 = por %p56, %p57
      %p59 = scmp.ne.s32.totalorder %s50, %s51
      %p60 = scmp.eq.s32.totalorder %s19, 0
      %p61 = por %p59, %p60
      %p62 = scmp.ne.s32.totalorder %s50, %s51
      %p63 = scmp.eq.s32.totalorder %s20, 1
      %p64 = por %p62, %p63
      %p66 = scmp.ne.s32.totalorder %s51, %s65
      %p67 = scmp.eq.s32.totalorder %s20, 0
      %p68 = por %p66, %p67
      %s70 = sadd.s32 %s69, 1
      %p73 = scmp.eq.s32.totalorder %s14, 1
      %p74 = scmp.ne.s32.totalorder %s69, %s71
      %p75 = scmp.eq.s32.totalorder %s14, 0
      %p76 = por %p74, %p75
      %p77 = scmp.ne.s32.totalorder %s69, %s71
      %p78 = scmp.eq.s32.totalorder %s19, 1
      %p79 = por %p77, %p78
      %p80 = scmp.ne.s32.totalorder %s71, %s72
      %p81 = scmp.eq.s32.totalorder %s19, 0
      %p82 = por %p80, %p81
      %p83 = scmp.ne.s32.totalorder %s71, %s72
      %p84 = scmp.eq.s32.totalorder %s20, 1
      %p85 = por %p83, %p84
      %p87 = scmp.ne.s32.totalorder %s72, %s86
      %p88 = scmp.eq.s32.totalorder %s20, 0
      %p89 = por %p87, %p88
      %s90 = ssub.s32 %s14, %s21
      %p91 = scmp.eq.s32.totalorder %s90, 0
      %s93 = sadd.s32 %s92, 1
      %s94 = scalar_select %p91, %s92, %s93
      %p97 = pneg %p91
      %p98 = scmp.eq.s32.totalorder %s14, 1
      %p99 = por %p97, %p98
      %p100 = scmp.ne.s32.totalorder %s92, %s95
      %p101 = scmp.eq.s32.totalorder %s14, 0
      %p102 = por %p100, %p101
      %p103 = scmp.ne.s32.totalorder %s92, %s95
      %p104 = scmp.eq.s32.totalorder %s19, 1
      %p105 = por %p103, %p104
      %p106 = scmp.ne.s32.totalorder %s95, %s96
      %p107 = scmp.eq.s32.totalorder %s19, 0
      %p108 = por %p106, %p107
      %p109 = scmp.ne.s32.totalorder %s95, %s96
      %p110 = scmp.eq.s32.totalorder %s20, 1
      %p111 = por %p109, %p110
      %p113 = scmp.ne.s32.totalorder %s96, %s112
      %p114 = scmp.eq.s32.totalorder %s20, 0
      %p115 = por %p113, %p114
      %s116 = ssub.s32 %s14, %s21
      %p117 = scmp.eq.s32.totalorder %s116, 0
      %s119 = sadd.s32 %s118, 1
      %s120 = scalar_select %p117, %s118, %s119
      %p123 = pneg %p117
      %p124 = scmp.eq.s32.totalorder %s14, 1
      %p125 = por %p123, %p124
      %p126 = scmp.ne.s32.totalorder %s118, %s121
      %p127 = scmp.eq.s32.totalorder %s14, 0
      %p128 = por %p126, %p127
      %p129 = scmp.ne.s32.totalorder %s118, %s121
      %p130 = scmp.eq.s32.totalorder %s19, 1
      %p131 = por %p129, %p130
      %p132 = scmp.ne.s32.totalorder %s121, %s122
      %p133 = scmp.eq.s32.totalorder %s19, 0
      %p134 = por %p132, %p133
      %p135 = scmp.ne.s32.totalorder %s121, %s122
      %p136 = scmp.eq.s32.totalorder %s20, 1
      %p137 = por %p135, %p136
      %p139 = scmp.ne.s32.totalorder %s122, %s138
      %p140 = scmp.eq.s32.totalorder %s20, 0
      %p141 = por %p139, %p140
      %p142 = scmp.le.s32.totalorder 1, %s14
      %p143 = scmp.lt.s32.totalorder %s14, 3
      %p144 = pnand %p142, %p143
      %p145 = pneg %p144
      // Predicated region
      $region9: #{tpu_custom_call.1} parent=5 // pred_check
        _
      $region10: #{tpu_custom_call.1} parent=5 // pred_check_branch
        %147 = sbr.rel (%p144) target = $region12
      $region11: #{tpu_custom_call.1} parent=5 // pred_region
        %s148 = ssub.s32 %s14, 1
        // Predicated region
        $region13: #{tpu_custom_call.1} parent=11 // pred_check
          %p149 = pneg %p61
        $region14: #{tpu_custom_call.1} parent=11 // pred_check_branch
          %151 = sbr.rel (%p149) target = $region16
        $region15: #{tpu_custom_call.1} parent=11 // pred_region
          _
        $region16: #{tpu_custom_call.1} parent=11 // pred_fallthru
          _
        // Predicated region
        $region17: #{tpu_custom_call.1} parent=11 // pred_check
          %p152 = pneg %p82
        $region18: #{tpu_custom_call.1} parent=11 // pred_check_branch
          %154 = sbr.rel (%p152) target = $region20
        $region19: #{tpu_custom_call.1} parent=11 // pred_region
          _
        $region20: #{tpu_custom_call.1} parent=11 // pred_fallthru
          _
      $region12: #{tpu_custom_call.1} parent=5 // pred_fallthru
        _
      %p155 = scmp.lt.s32.totalorder %s14, 2
      // Predicated region
      $region21: #{tpu_custom_call.1} parent=5 // pred_check
        %p156 = pneg %p155
      $region22: #{tpu_custom_call.1} parent=5 // pred_check_branch
        %158 = sbr.rel (%p156) target = $region24
      $region23: #{tpu_custom_call.1} parent=5 // pred_region
        // Predicated region
        $region25: #{tpu_custom_call.1} parent=23 // pred_check
          %p159 = pneg %p34
        $region26: #{tpu_custom_call.1} parent=23 // pred_check_branch
          %161 = sbr.rel (%p159) target = $region28
        $region27: #{tpu_custom_call.1} parent=23 // pred_region
          %p162 = scmp.lt.s32.totalorder %s14, 1
          %s163 = scalar_select %p162, %s14, 1
          %s164 = smul.addr %s163, 3
          %s165 = smul.addr %s164, 4
          %s166 = scalar_lea.vmem %s0, %s165
        $region28: #{tpu_custom_call.1} parent=23 // pred_fallthru
          _
      $region24: #{tpu_custom_call.1} parent=5 // pred_fallthru
        _
      %p167 = scmp.le.s32.totalorder 1, %s14
      %p168 = scmp.lt.s32.totalorder %s14, 3
      %p169 = pnand %p167, %p168
      %p170 = pneg %p169
      // Predicated region
      $region29: #{tpu_custom_call.1} parent=5 // pred_check
        _
      $region30: #{tpu_custom_call.1} parent=5 // pred_check_branch
        %172 = sbr.rel (%p169) target = $region32
      $region31: #{tpu_custom_call.1} parent=5 // pred_region
        %s173 = ssub.s32 %s14, 1
        %p174 = scmp.lt.s32.totalorder %s19, 1
        %s175 = scalar_select %p174, %s19, 1
        %s176 = smul.addr %s175, 3
        %s177 = smul.addr %s176, 4
        %s178 = scalar_lea.vmem %s0, %s177
        %p179 = pneg %p40
        %p180 = pneg %p37
        %p181 = pneg %p61
        %p182 = pneg %p58
        %p183 = pneg %p82
        %p184 = pneg %p79
        %p185 = pneg %p108
        %p186 = pneg %p105
        %s187 = sand.u32 %s95, 1
        %s188 = scalar_lea.sflag [#allocation4], %s187
        %s189 = sand.u32 %s95, 1
        %s190 = smul.addr %s189, 12
        %s191 = scalar_lea.vmem [#allocation3], %s190
        %p192 = pneg %p134
        %p193 = pneg %p131
        %p194 = scmp.lt.s32.totalorder %s19, 1
        %s195 = scalar_select %p194, %s19, 1
        %s196 = smul.addr %s195, 8
        %s197 = scalar_lea.vmem %s4, %s196
        %p198 = scmp.lt.s32.totalorder %s19, 1
        %s199 = scalar_select %p198, %s19, 1
        %s200 = smul.addr %s199, 3
        %s201 = smul.addr %s200, 4
        %s202 = scalar_lea.vmem %s0, %s201
        %p203 = scmp.lt.s32.totalorder %s19, 1
        %s204 = scalar_select %p203, %s19, 1
        %s205 = smul.addr %s204, 8
        %s206 = scalar_lea.vmem %s4, %s205
        %v208 = vld [vmem:[%s2] sm:$0x7]
        %vm209 = vcmask 289792
        %210 = vst.msk [vmem:[#allocation2] sm:$0xf] %vm209, 0
        %vm211 = vcmask 584992
        %212 = vst.msk [vmem:[#allocation2 + $0xc] sm:$0xf] %vm211, 0
        %v213 = vld [vmem:[%s202] sm:$0xff]
        %v214 = vld [vmem:[%s202 + $0x8] sm:$0xf]
        %217 = vrot.lane.b32.xlu0 %v213, 36
        %v218 = vpop.permute.xlu0 %217
        %219 = vrot.lane.b32.xlu0 %v214, 36
        %v220 = vpop.permute.xlu0 %219
        %v221 = vrot.slane %v218, 4
        %v222 = vrot.slane %v220, 4
        %vm223 = vcmask 293888
        %v224 = vsel %vm223, %v221, %v218
        %vm225 = vcmask 1043456
        %v226 = vsel %vm225, %v221, %v222
        %v227 = vsel %vm223, %v226, %v220
        %vm230 = vcmask 1043744
        %vm231 = vcmask 1047556
        %vm232 = vmor %vm231, %vm230
        %233 = vst.msk [vmem:[#allocation2] sm:$0xff] %vm232, %v224
        %vm234 = vcmask 1043456
        %vm235 = vcmask 293892
        %vm236 = vmor %vm235, %vm234
        %237 = vst.msk [vmem:[#allocation2 + $0x8] sm:$0xff] %vm236, %v227
        %v238 = vld [vmem:[%s1] sm:$0xf]
        %v239 = vld [vmem:[#allocation2] sm:$0xff]
        %v240 = vld [vmem:[#allocation2 + $0x8] sm:$0xff]
        %s241 = scalar_lea.vmem %s1, 4
        %v242 = vld [vmem:[%s241] sm:$0xf]
        %v245 = vunpack.c.l.b16 %v239
        %v246 = vunpack.c.h.b16 %v239
        %v247 = vunpack.c.l.b16 %v240
        %v248 = vunpack.c.h.b16 %v240
        %v249 = vpack.c.b16 %v245, %v245
        %v250 = vpack.c.b16 %v246, %v246
        %v251 = vpack.c.b16 %v247, %v247
        %v252 = vpack.c.b16 %v248, %v248
        %253 = vrot.lane.b32.xlu0 %v249, 110
        %v254 = vpop.permute.xlu0 %253
        %255 = vrot.lane.b32.xlu0 %v250, 110
        %v256 = vpop.permute.xlu0 %255
        %257 = vrot.lane.b32.xlu0 %v251, 110
        %v258 = vpop.permute.xlu0 %257
        %259 = vrot.lane.b32.xlu0 %v252, 110
        %v260 = vpop.permute.xlu0 %259
        %vm261 = vcmask 900096
        %v262 = vsel %vm261, %v254, %v256
        %v263 = vsel %vm261, %v256, %v258
        %v264 = vsel %vm261, %v258, %v260
        %vm265 = vcmask 64512
        %v267 = vsel %vm265, %v242, 0
        %v270 = vsel %vm234, %v262, 0
        %v273 = vsel %vm234, %v263, 0
        %v276 = vsel %vm234, %v264, 0
        %278 = vmatpush.bf16.msra.mxu0 0
        %279 = vmatpush.bf16.msra.mxu0 0
        %280 = vmatpush.bf16.msra.mxu0 0
        %281 = vmatpush.bf16.msra.mxu0 0
        %282 = vmatpush.bf16.msra.mxu0 0
        %283 = vmatpush.bf16.msra.mxu0 0
        %284 = vmatpush.bf16.msra.mxu0 0
        %285 = vmatpush.bf16.msra.mxu0 %v270
        %286 = vmatmul.bf16.gmra.mxu0 %v267
        %v287 = vpop.f32.mrf.mxu0
        %v288 = vadd.f32 0.0, %v287
        %v289 = vpop.f32.mrf.mxu0
        %290 = vdwg.mxu0
        %291 = vmatpush.bf16.msra.mxu0 0
        %292 = vmatpush.bf16.msra.mxu0 0
        %293 = vmatpush.bf16.msra.mxu0 0
        %294 = vmatpush.bf16.msra.mxu0 0
        %295 = vmatpush.bf16.msra.mxu0 0
        %296 = vmatpush.bf16.msra.mxu0 0
        %297 = vmatpush.bf16.msra.mxu0 0
        %298 = vmatpush.bf16.msra.mxu0 %v273
        %299 = vmatmul.bf16.gmra.mxu0 %v267
        %v300 = vpop.f32.mrf.mxu0
        %v301 = vadd.f32 0.0, %v300
        %v302 = vpop.f32.mrf.mxu0
        %303 = vdwg.mxu0
        %304 = vmatpush.bf16.msra.mxu0 0
        %305 = vmatpush.bf16.msra.mxu0 0
        %306 = vmatpush.bf16.msra.mxu0 0
        %307 = vmatpush.bf16.msra.mxu0 0
        %308 = vmatpush.bf16.msra.mxu0 0
        %309 = vmatpush.bf16.msra.mxu0 0
        %310 = vmatpush.bf16.msra.mxu0 0
        %311 = vmatpush.bf16.msra.mxu0 %v276
        %312 = vmatmul.bf16.gmra.mxu0 %v267
        %v313 = vpop.f32.mrf.mxu0
        %v314 = vadd.f32 0.0, %v313
        %v315 = vpop.f32.mrf.mxu0
        %316 = vdwg.mxu0
        %317 = vrot.lane.b32.xlu0 %v249, 111
        %v318 = vpop.permute.xlu0 %317
        %319 = vrot.lane.b32.xlu0 %v250, 111
        %v320 = vpop.permute.xlu0 %319
        %321 = vrot.lane.b32.xlu0 %v251, 111
        %v322 = vpop.permute.xlu0 %321
        %323 = vrot.lane.b32.xlu0 %v252, 111
        %v324 = vpop.permute.xlu0 %323
        %vm325 = vcmask 908288
        %v326 = vsel %vm325, %v318, %v320
        %v327 = vsel %vm325, %v320, %v322
        %v328 = vsel %vm325, %v322, %v324
        %v330 = vsel %vm265, %v238, 0
        %v333 = vsel %vm234, %v326, 0
        %v336 = vsel %vm234, %v327, 0
        %v339 = vsel %vm234, %v328, 0
        %341 = vmatpush.bf16.msra.mxu0 0
        %342 = vmatpush.bf16.msra.mxu0 0
        %343 = vmatpush.bf16.msra.mxu0 0
        %344 = vmatpush.bf16.msra.mxu0 0
        %345 = vmatpush.bf16.msra.mxu0 0
        %346 = vmatpush.bf16.msra.mxu0 0
        %347 = vmatpush.bf16.msra.mxu0 0
        %348 = vmatpush.bf16.msra.mxu0 %v333
        %349 = vmatmul.bf16.gmra.mxu0 %v330
        %v350 = vpop.f32.mrf.mxu0
        %v351 = vadd.f32 %v288, %v350
        %v352 = vpop.f32.mrf.mxu0
        %353 = vdwg.mxu0
        %354 = vmatpush.bf16.msra.mxu0 0
        %355 = vmatpush.bf16.msra.mxu0 0
        %356 = vmatpush.bf16.msra.mxu0 0
        %357 = vmatpush.bf16.msra.mxu0 0
        %358 = vmatpush.bf16.msra.mxu0 0
        %359 = vmatpush.bf16.msra.mxu0 0
        %360 = vmatpush.bf16.msra.mxu0 0
        %361 = vmatpush.bf16.msra.mxu0 %v336
        %362 = vmatmul.bf16.gmra.mxu0 %v330
        %v363 = vpop.f32.mrf.mxu0
        %v364 = vadd.f32 %v301, %v363
        %v365 = vpop.f32.mrf.mxu0
        %366 = vdwg.mxu0
        %367 = vmatpush.bf16.msra.mxu0 0
        %368 = vmatpush.bf16.msra.mxu0 0
        %369 = vmatpush.bf16.msra.mxu0 0
        %370 = vmatpush.bf16.msra.mxu0 0
        %371 = vmatpush.bf16.msra.mxu0 0
        %372 = vmatpush.bf16.msra.mxu0 0
        %373 = vmatpush.bf16.msra.mxu0 0
        %374 = vmatpush.bf16.msra.mxu0 %v339
        %375 = vmatmul.bf16.gmra.mxu0 %v330
        %v376 = vpop.f32.mrf.mxu0
        %v377 = vadd.f32 %v314, %v376
        %v378 = vpop.f32.mrf.mxu0
        %379 = vdwg.mxu0
        %s380 = scalar_lea.vmem %s1, 8
        %v381 = vld [vmem:[%s380] sm:$0xf]
        %382 = vrot.lane.b32.xlu0 %v249, 109
        %v383 = vpop.permute.xlu0 %382
        %384 = vrot.lane.b32.xlu0 %v250, 109
        %v385 = vpop.permute.xlu0 %384
        %386 = vrot.lane.b32.xlu0 %v251, 109
        %v387 = vpop.permute.xlu0 %386
        %388 = vrot.lane.b32.xlu0 %v252, 109
        %v389 = vpop.permute.xlu0 %388
        %vm390 = vcmask 891904
        %v391 = vsel %vm390, %v383, %v385
        %v392 = vsel %vm390, %v385, %v387
        %v393 = vsel %vm390, %v387, %v389
        %v395 = vsel %vm265, %v381, 0
        %v398 = vsel %vm234, %v391, 0
        %v401 = vsel %vm234, %v392, 0
        %v404 = vsel %vm234, %v393, 0
        %406 = vmatpush.bf16.msra.mxu0 0
        %407 = vmatpush.bf16.msra.mxu0 0
        %408 = vmatpush.bf16.msra.mxu0 0
        %409 = vmatpush.bf16.msra.mxu0 0
        %410 = vmatpush.bf16.msra.mxu0 0
        %411 = vmatpush.bf16.msra.mxu0 0
        %412 = vmatpush.bf16.msra.mxu0 0
        %413 = vmatpush.bf16.msra.mxu0 %v398
        %414 = vmatmul.bf16.gmra.mxu0 %v395
        %v415 = vpop.f32.mrf.mxu0
        %v416 = vadd.f32 0.0, %v415
        %v417 = vpop.f32.mrf.mxu0
        %418 = vdwg.mxu0
        %419 = vmatpush.bf16.msra.mxu0 0
        %420 = vmatpush.bf16.msra.mxu0 0
        %421 = vmatpush.bf16.msra.mxu0 0
        %422 = vmatpush.bf16.msra.mxu0 0
        %423 = vmatpush.bf16.msra.mxu0 0
        %424 = vmatpush.bf16.msra.mxu0 0
        %425 = vmatpush.bf16.msra.mxu0 0
        %426 = vmatpush.bf16.msra.mxu0 %v401
        %427 = vmatmul.bf16.gmra.mxu0 %v395
        %v428 = vpop.f32.mrf.mxu0
        %v429 = vadd.f32 0.0, %v428
        %v430 = vpop.f32.mrf.mxu0
        %431 = vdwg.mxu0
        %432 = vmatpush.bf16.msra.mxu0 0
        %433 = vmatpush.bf16.msra.mxu0 0
        %434 = vmatpush.bf16.msra.mxu0 0
        %435 = vmatpush.bf16.msra.mxu0 0
        %436 = vmatpush.bf16.msra.mxu0 0
        %437 = vmatpush.bf16.msra.mxu0 0
        %438 = vmatpush.bf16.msra.mxu0 0
        %439 = vmatpush.bf16.msra.mxu0 %v404
        %440 = vmatmul.bf16.gmra.mxu0 %v395
        %v441 = vpop.f32.mrf.mxu0
        %v442 = vadd.f32 0.0, %v441
        %v443 = vpop.f32.mrf.mxu0
        %444 = vdwg.mxu0
        %v445 = vadd.f32 %v351, %v416
        %v446 = vadd.f32 %v364, %v429
        %v447 = vadd.f32 %v377, %v442
        %s448 = scalar_lea.vmem %s1, 12
        %v449 = vld [vmem:[%s448] sm:$0xf]
        %450 = vrot.lane.b32.xlu0 %v249, 93
        %v451 = vpop.permute.xlu0 %450
        %452 = vrot.lane.b32.xlu0 %v250, 93
        %v453 = vpop.permute.xlu0 %452
        %454 = vrot.lane.b32.xlu0 %v251, 93
        %v455 = vpop.permute.xlu0 %454
        %456 = vrot.lane.b32.xlu0 %v252, 93
        %v457 = vpop.permute.xlu0 %456
        %vm458 = vcmask 760832
        %v459 = vsel %vm458, %v451, %v453
        %v460 = vsel %vm458, %v453, %v455
        %v461 = vsel %vm458, %v455, %v457
        %v463 = vsel %vm265, %v449, 0
        %v466 = vsel %vm234, %v459, 0
        %v469 = vsel %vm234, %v460, 0
        %v472 = vsel %vm234, %v461, 0
        %474 = vmatpush.bf16.msra.mxu0 0
        %475 = vmatpush.bf16.msra.mxu0 0
        %476 = vmatpush.bf16.msra.mxu0 0
        %477 = vmatpush.bf16.msra.mxu0 0
        %478 = vmatpush.bf16.msra.mxu0 0
        %479 = vmatpush.bf16.msra.mxu0 0
        %480 = vmatpush.bf16.msra.mxu0 0
        %481 = vmatpush.bf16.msra.mxu0 %v466
        %482 = vmatmul.bf16.gmra.mxu0 %v463
        %v483 = vpop.f32.mrf.mxu0
        %v484 = vadd.f32 0.0, %v483
        %v485 = vpop.f32.mrf.mxu0
        %486 = vdwg.mxu0
        %487 = vmatpush.bf16.msra.mxu0 0
        %488 = vmatpush.bf16.msra.mxu0 0
        %489 = vmatpush.bf16.msra.mxu0 0
        %490 = vmatpush.bf16.msra.mxu0 0
        %491 = vmatpush.bf16.msra.mxu0 0
        %492 = vmatpush.bf16.msra.mxu0 0
        %493 = vmatpush.bf16.msra.mxu0 0
        %494 = vmatpush.bf16.msra.mxu0 %v469
        %495 = vmatmul.bf16.gmra.mxu0 %v463
        %v496 = vpop.f32.mrf.mxu0
        %v497 = vadd.f32 0.0, %v496
        %v498 = vpop.f32.mrf.mxu0
        %499 = vdwg.mxu0
        %500 = vmatpush.bf16.msra.mxu0 0
        %501 = vmatpush.bf16.msra.mxu0 0
        %502 = vmatpush.bf16.msra.mxu0 0
        %503 = vmatpush.bf16.msra.mxu0 0
        %504 = vmatpush.bf16.msra.mxu0 0
        %505 = vmatpush.bf16.msra.mxu0 0
        %506 = vmatpush.bf16.msra.mxu0 0
        %507 = vmatpush.bf16.msra.mxu0 %v472
        %508 = vmatmul.bf16.gmra.mxu0 %v463
        %v509 = vpop.f32.mrf.mxu0
        %v510 = vadd.f32 0.0, %v509
        %v511 = vpop.f32.mrf.mxu0
        %512 = vdwg.mxu0
        %v513 = vadd.f32 %v445, %v484
        %v514 = vadd.f32 %v446, %v497
        %v515 = vadd.f32 %v447, %v510
        %s516 = scalar_lea.vmem %s1, 16
        %v517 = vld [vmem:[%s516] sm:$0xf]
        %518 = vrot.lane.b32.xlu0 %v249, 92
        %v519 = vpop.permute.xlu0 %518
        %520 = vrot.lane.b32.xlu0 %v250, 92
        %v521 = vpop.permute.xlu0 %520
        %522 = vrot.lane.b32.xlu0 %v251, 92
        %v523 = vpop.permute.xlu0 %522
        %524 = vrot.lane.b32.xlu0 %v252, 92
        %v525 = vpop.permute.xlu0 %524
        %vm526 = vcmask 752640
        %v527 = vsel %vm526, %v519, %v521
        %v528 = vsel %vm526, %v521, %v523
        %v529 = vsel %vm526, %v523, %v525
        %v531 = vsel %vm265, %v517, 0
        %v534 = vsel %vm234, %v527, 0
        %v537 = vsel %vm234, %v528, 0
        %v540 = vsel %vm234, %v529, 0
        %542 = vmatpush.bf16.msra.mxu0 0
        %543 = vmatpush.bf16.msra.mxu0 0
        %544 = vmatpush.bf16.msra.mxu0 0
        %545 = vmatpush.bf16.msra.mxu0 0
        %546 = vmatpush.bf16.msra.mxu0 0
        %547 = vmatpush.bf16.msra.mxu0 0
        %548 = vmatpush.bf16.msra.mxu0 0
        %549 = vmatpush.bf16.msra.mxu0 %v534
        %550 = vmatmul.bf16.gmra.mxu0 %v531
        %v551 = vpop.f32.mrf.mxu0
        %v552 = vadd.f32 0.0, %v551
        %v553 = vpop.f32.mrf.mxu0
        %554 = vdwg.mxu0
        %555 = vmatpush.bf16.msra.mxu0 0
        %556 = vmatpush.bf16.msra.mxu0 0
        %557 = vmatpush.bf16.msra.mxu0 0
        %558 = vmatpush.bf16.msra.mxu0 0
        %559 = vmatpush.bf16.msra.mxu0 0
        %560 = vmatpush.bf16.msra.mxu0 0
        %561 = vmatpush.bf16.msra.mxu0 0
        %562 = vmatpush.bf16.msra.mxu0 %v537
        %563 = vmatmul.bf16.gmra.mxu0 %v531
        %v564 = vpop.f32.mrf.mxu0
        %v565 = vadd.f32 0.0, %v564
        %v566 = vpop.f32.mrf.mxu0
        %567 = vdwg.mxu0
        %568 = vmatpush.bf16.msra.mxu0 0
        %569 = vmatpush.bf16.msra.mxu0 0
        %570 = vmatpush.bf16.msra.mxu0 0
        %571 = vmatpush.bf16.msra.mxu0 0
        %572 = vmatpush.bf16.msra.mxu0 0
        %573 = vmatpush.bf16.msra.mxu0 0
        %574 = vmatpush.bf16.msra.mxu0 0
        %575 = vmatpush.bf16.msra.mxu0 %v540
        %576 = vmatmul.bf16.gmra.mxu0 %v531
        %v577 = vpop.f32.mrf.mxu0
        %v578 = vadd.f32 0.0, %v577
        %v579 = vpop.f32.mrf.mxu0
        %580 = vdwg.mxu0
        %v581 = vadd.f32 %v513, %v552
        %v582 = vadd.f32 %v514, %v565
        %v583 = vadd.f32 %v515, %v578
        %s584 = scalar_lea.vmem %s1, 20
        %v585 = vld [vmem:[%s584] sm:$0xf]
        %586 = vrot.lane.b32.xlu0 %v249, 91
        %v587 = vpop.permute.xlu0 %586
        %588 = vrot.lane.b32.xlu0 %v250, 91
        %v589 = vpop.permute.xlu0 %588
        %590 = vrot.lane.b32.xlu0 %v251, 91
        %v591 = vpop.permute.xlu0 %590
        %592 = vrot.lane.b32.xlu0 %v252, 91
        %v593 = vpop.permute.xlu0 %592
        %vm594 = vcmask 744448
        %v595 = vsel %vm594, %v587, %v589
        %v596 = vsel %vm594, %v589, %v591
        %v597 = vsel %vm594, %v591, %v593
        %v599 = vsel %vm265, %v585, 0
        %v602 = vsel %vm234, %v595, 0
        %v605 = vsel %vm234, %v596, 0
        %v608 = vsel %vm234, %v597, 0
        %610 = vmatpush.bf16.msra.mxu0 0
        %611 = vmatpush.bf16.msra.mxu0 0
        %612 = vmatpush.bf16.msra.mxu0 0
        %613 = vmatpush.bf16.msra.mxu0 0
        %614 = vmatpush.bf16.msra.mxu0 0
        %615 = vmatpush.bf16.msra.mxu0 0
        %616 = vmatpush.bf16.msra.mxu0 0
        %617 = vmatpush.bf16.msra.mxu0 %v602
        %618 = vmatmul.bf16.gmra.mxu0 %v599
        %v619 = vpop.f32.mrf.mxu0
        %v620 = vadd.f32 0.0, %v619
        %v621 = vpop.f32.mrf.mxu0
        %622 = vdwg.mxu0
        %623 = vmatpush.bf16.msra.mxu0 0
        %624 = vmatpush.bf16.msra.mxu0 0
        %625 = vmatpush.bf16.msra.mxu0 0
        %626 = vmatpush.bf16.msra.mxu0 0
        %627 = vmatpush.bf16.msra.mxu0 0
        %628 = vmatpush.bf16.msra.mxu0 0
        %629 = vmatpush.bf16.msra.mxu0 0
        %630 = vmatpush.bf16.msra.mxu0 %v605
        %631 = vmatmul.bf16.gmra.mxu0 %v599
        %v632 = vpop.f32.mrf.mxu0
        %v633 = vadd.f32 0.0, %v632
        %v634 = vpop.f32.mrf.mxu0
        %635 = vdwg.mxu0
        %636 = vmatpush.bf16.msra.mxu0 0
        %637 = vmatpush.bf16.msra.mxu0 0
        %638 = vmatpush.bf16.msra.mxu0 0
        %639 = vmatpush.bf16.msra.mxu0 0
        %640 = vmatpush.bf16.msra.mxu0 0
        %641 = vmatpush.bf16.msra.mxu0 0
        %642 = vmatpush.bf16.msra.mxu0 0
        %643 = vmatpush.bf16.msra.mxu0 %v608
        %644 = vmatmul.bf16.gmra.mxu0 %v599
        %v645 = vpop.f32.mrf.mxu0
        %v646 = vadd.f32 0.0, %v645
        %v647 = vpop.f32.mrf.mxu0
        %648 = vdwg.mxu0
        %v649 = vadd.f32 %v581, %v620
        %v650 = vadd.f32 %v582, %v633
        %v651 = vadd.f32 %v583, %v646
        %s652 = scalar_lea.vmem %s1, 24
        %v653 = vld [vmem:[%s652] sm:$0xf]
        %654 = vrot.lane.b32.xlu0 %v249, 75
        %v655 = vpop.permute.xlu0 %654
        %656 = vrot.lane.b32.xlu0 %v250, 75
        %v657 = vpop.permute.xlu0 %656
        %658 = vrot.lane.b32.xlu0 %v251, 75
        %v659 = vpop.permute.xlu0 %658
        %660 = vrot.lane.b32.xlu0 %v252, 75
        %v661 = vpop.permute.xlu0 %660
        %vm662 = vcmask 613376
        %v663 = vsel %vm662, %v655, %v657
        %v664 = vsel %vm662, %v657, %v659
        %v665 = vsel %vm662, %v659, %v661
        %v667 = vsel %vm265, %v653, 0
        %v670 = vsel %vm234, %v663, 0
        %v673 = vsel %vm234, %v664, 0
        %v676 = vsel %vm234, %v665, 0
        %678 = vmatpush.bf16.msra.mxu0 0
        %679 = vmatpush.bf16.msra.mxu0 0
        %680 = vmatpush.bf16.msra.mxu0 0
        %681 = vmatpush.bf16.msra.mxu0 0
        %682 = vmatpush.bf16.msra.mxu0 0
        %683 = vmatpush.bf16.msra.mxu0 0
        %684 = vmatpush.bf16.msra.mxu0 0
        %685 = vmatpush.bf16.msra.mxu0 %v670
        %686 = vmatmul.bf16.gmra.mxu0 %v667
        %v687 = vpop.f32.mrf.mxu0
        %v688 = vadd.f32 0.0, %v687
        %v689 = vpop.f32.mrf.mxu0
        %690 = vdwg.mxu0
        %691 = vmatpush.bf16.msra.mxu0 0
        %692 = vmatpush.bf16.msra.mxu0 0
        %693 = vmatpush.bf16.msra.mxu0 0
        %694 = vmatpush.bf16.msra.mxu0 0
        %695 = vmatpush.bf16.msra.mxu0 0
        %696 = vmatpush.bf16.msra.mxu0 0
        %697 = vmatpush.bf16.msra.mxu0 0
        %698 = vmatpush.bf16.msra.mxu0 %v673
        %699 = vmatmul.bf16.gmra.mxu0 %v667
        %v700 = vpop.f32.mrf.mxu0
        %v701 = vadd.f32 0.0, %v700
        %v702 = vpop.f32.mrf.mxu0
        %703 = vdwg.mxu0
        %704 = vmatpush.bf16.msra.mxu0 0
        %705 = vmatpush.bf16.msra.mxu0 0
        %706 = vmatpush.bf16.msra.mxu0 0
        %707 = vmatpush.bf16.msra.mxu0 0
        %708 = vmatpush.bf16.msra.mxu0 0
        %709 = vmatpush.bf16.msra.mxu0 0
        %710 = vmatpush.bf16.msra.mxu0 0
        %711 = vmatpush.bf16.msra.mxu0 %v676
        %712 = vmatmul.bf16.gmra.mxu0 %v667
        %v713 = vpop.f32.mrf.mxu0
        %v714 = vadd.f32 0.0, %v713
        %v715 = vpop.f32.mrf.mxu0
        %716 = vdwg.mxu0
        %v717 = vadd.f32 %v649, %v688
        %v718 = vadd.f32 %v650, %v701
        %v719 = vadd.f32 %v651, %v714
        %s720 = scalar_lea.vmem %s1, 28
        %v721 = vld [vmem:[%s720] sm:$0xf]
        %722 = vrot.lane.b32.xlu0 %v249, 74
        %v723 = vpop.permute.xlu0 %722
        %724 = vrot.lane.b32.xlu0 %v250, 74
        %v725 = vpop.permute.xlu0 %724
        %726 = vrot.lane.b32.xlu0 %v251, 74
        %v727 = vpop.permute.xlu0 %726
        %728 = vrot.lane.b32.xlu0 %v252, 74
        %v729 = vpop.permute.xlu0 %728
        %vm730 = vcmask 605184
        %v731 = vsel %vm730, %v723, %v725
        %v732 = vsel %vm730, %v725, %v727
        %v733 = vsel %vm730, %v727, %v729
        %v735 = vsel %vm265, %v721, 0
        %v738 = vsel %vm234, %v731, 0
        %v741 = vsel %vm234, %v732, 0
        %v744 = vsel %vm234, %v733, 0
        %746 = vmatpush.bf16.msra.mxu0 0
        %747 = vmatpush.bf16.msra.mxu0 0
        %748 = vmatpush.bf16.msra.mxu0 0
        %749 = vmatpush.bf16.msra.mxu0 0
        %750 = vmatpush.bf16.msra.mxu0 0
        %751 = vmatpush.bf16.msra.mxu0 0
        %752 = vmatpush.bf16.msra.mxu0 0
        %753 = vmatpush.bf16.msra.mxu0 %v738
        %754 = vmatmul.bf16.gmra.mxu0 %v735
        %v755 = vpop.f32.mrf.mxu0
        %v756 = vadd.f32 0.0, %v755
        %v757 = vpop.f32.mrf.mxu0
        %758 = vdwg.mxu0
        %759 = vmatpush.bf16.msra.mxu0 0
        %760 = vmatpush.bf16.msra.mxu0 0
        %761 = vmatpush.bf16.msra.mxu0 0
        %762 = vmatpush.bf16.msra.mxu0 0
        %763 = vmatpush.bf16.msra.mxu0 0
        %764 = vmatpush.bf16.msra.mxu0 0
        %765 = vmatpush.bf16.msra.mxu0 0
        %766 = vmatpush.bf16.msra.mxu0 %v741
        %767 = vmatmul.bf16.gmra.mxu0 %v735
        %v768 = vpop.f32.mrf.mxu0
        %v769 = vadd.f32 0.0, %v768
        %v770 = vpop.f32.mrf.mxu0
        %771 = vdwg.mxu0
        %772 = vmatpush.bf16.msra.mxu0 0
        %773 = vmatpush.bf16.msra.mxu0 0
        %774 = vmatpush.bf16.msra.mxu0 0
        %775 = vmatpush.bf16.msra.mxu0 0
        %776 = vmatpush.bf16.msra.mxu0 0
        %777 = vmatpush.bf16.msra.mxu0 0
        %778 = vmatpush.bf16.msra.mxu0 0
        %779 = vmatpush.bf16.msra.mxu0 %v744
        %780 = vmatmul.bf16.gmra.mxu0 %v735
        %v781 = vpop.f32.mrf.mxu0
        %v782 = vadd.f32 0.0, %v781
        %v783 = vpop.f32.mrf.mxu0
        %784 = vdwg.mxu0
        %v785 = vadd.f32 %v717, %v756
        %v786 = vadd.f32 %v718, %v769
        %v787 = vadd.f32 %v719, %v782
        %s788 = scalar_lea.vmem %s1, 32
        %v789 = vld [vmem:[%s788] sm:$0xf]
        %790 = vrot.lane.b32.xlu0 %v249, 73
        %v791 = vpop.permute.xlu0 %790
        %792 = vrot.lane.b32.xlu0 %v250, 73
        %v793 = vpop.permute.xlu0 %792
        %794 = vrot.lane.b32.xlu0 %v251, 73
        %v795 = vpop.permute.xlu0 %794
        %796 = vrot.lane.b32.xlu0 %v252, 73
        %v797 = vpop.permute.xlu0 %796
        %vm798 = vcmask 596992
        %v799 = vsel %vm798, %v791, %v793
        %v800 = vsel %vm798, %v793, %v795
        %v801 = vsel %vm798, %v795, %v797
        %v803 = vsel %vm265, %v789, 0
        %v806 = vsel %vm234, %v799, 0
        %v809 = vsel %vm234, %v800, 0
        %v812 = vsel %vm234, %v801, 0
        %814 = vmatpush.bf16.msra.mxu0 0
        %815 = vmatpush.bf16.msra.mxu0 0
        %816 = vmatpush.bf16.msra.mxu0 0
        %817 = vmatpush.bf16.msra.mxu0 0
        %818 = vmatpush.bf16.msra.mxu0 0
        %819 = vmatpush.bf16.msra.mxu0 0
        %820 = vmatpush.bf16.msra.mxu0 0
        %821 = vmatpush.bf16.msra.mxu0 %v806
        %822 = vmatmul.bf16.gmra.mxu0 %v803
        %v823 = vpop.f32.mrf.mxu0
        %v824 = vadd.f32 0.0, %v823
        %v825 = vpop.f32.mrf.mxu0
        %826 = vdwg.mxu0
        %827 = vmatpush.bf16.msra.mxu0 0
        %828 = vmatpush.bf16.msra.mxu0 0
        %829 = vmatpush.bf16.msra.mxu0 0
        %830 = vmatpush.bf16.msra.mxu0 0
        %831 = vmatpush.bf16.msra.mxu0 0
        %832 = vmatpush.bf16.msra.mxu0 0
        %833 = vmatpush.bf16.msra.mxu0 0
        %834 = vmatpush.bf16.msra.mxu0 %v809
        %835 = vmatmul.bf16.gmra.mxu0 %v803
        %v836 = vpop.f32.mrf.mxu0
        %v837 = vadd.f32 0.0, %v836
        %v838 = vpop.f32.mrf.mxu0
        %839 = vdwg.mxu0
        %840 = vmatpush.bf16.msra.mxu0 0
        %841 = vmatpush.bf16.msra.mxu0 0
        %842 = vmatpush.bf16.msra.mxu0 0
        %843 = vmatpush.bf16.msra.mxu0 0
        %844 = vmatpush.bf16.msra.mxu0 0
        %845 = vmatpush.bf16.msra.mxu0 0
        %846 = vmatpush.bf16.msra.mxu0 0
        %847 = vmatpush.bf16.msra.mxu0 %v812
        %848 = vmatmul.bf16.gmra.mxu0 %v803
        %v849 = vpop.f32.mrf.mxu0
        %v850 = vadd.f32 0.0, %v849
        %v851 = vpop.f32.mrf.mxu0
        %852 = vdwg.mxu0
        %v853 = vadd.f32 %v785, %v824
        %v854 = vadd.f32 %v786, %v837
        %v855 = vadd.f32 %v787, %v850
        %v857 = vperm.slane %v208, 0
        %v858 = vperm.slane %v208, 1
        %v859 = vperm.slane %v208, 2
        %v863 = vmul.f32 %v853, %v857
        %v864 = vmul.f32 %v854, %v858
        %v865 = vmul.f32 %v855, %v859
        %v866 = vadd.f32 %v863, %v864
        %v867 = vadd.f32 %v866, %v865
        %868 = vadd.xlane.f32.xlu0 %v867
        %v869 = vpop.xlane.xlu0 %868
        %v870 = vadd.f32 %v869, 0.0
        %v871 = vmul.f32 %v863, %v853
        %v872 = vmul.f32 %v864, %v854
        %v873 = vmul.f32 %v865, %v855
        %v874 = vadd.f32 %v871, %v872
        %v875 = vadd.f32 %v874, %v873
        %876 = vadd.xlane.f32.xlu0 %v875
        %v877 = vpop.xlane.xlu0 %876
        %v878 = vadd.f32 %v877, 0.0
        %v879 = vpack.c.bf16 %v854, %v853
        %v880 = vpack.c.bf16 %v855, %v855
        %881 = vst [vmem:[%s191] sm:$0xff] %v879
        %882 = vst [vmem:[%s191 + $0x8] sm:$0xf] %v880
        %vm883 = vcmask 7168
        %884 = vst.msk [vmem:[%s206] sm:$0xff] %vm883, %v870
        %vm885 = vcmask 15368
        %886 = vst.msk [vmem:[%s206] sm:$0xff] %vm885, %v878
        %s887 = sand.u32 %s95, 1
        %s888 = scalar_lea.sflag [#allocation4], %s887
        %s889 = sand.u32 %s95, 1
        %s890 = smul.addr %s889, 12
        %s891 = scalar_lea.vmem [#allocation3], %s890
        %p892 = scmp.lt.s32.totalorder %s19, 1
        %s893 = scalar_select %p892, %s19, 1
        %s894 = smul.addr %s893, 8
        %s895 = scalar_lea.vmem %s4, %s894
        // Predicated region
        $region33: #{tpu_custom_call.1} parent=31 // pred_check
          %p896 = pneg %p105
        $region34: #{tpu_custom_call.1} parent=31 // pred_check_branch
          %898 = sbr.rel (%p896) target = $region36
        $region35: #{tpu_custom_call.1} parent=31 // pred_region
          %900 = vsyncadd %s888, 0
          %s901 = smul.addr %s19, 3
          %s902 = smul.addr %s901, 4
          %s903 = scalar_lea.hbm %s3, %s902
          %s905 = sshll.u32 %s891, 4
          %s906 = int_to_ptr.vmem [resolvable:$true] %s905
          %s907 = sshll.u32 %s903, 4
          %s908 = int_to_ptr.hbm [resolvable:$true] %s907
          %910 = dma.vmem_to_hbm [thread:$0]  %s906, 192, %s908, %s888
        $region36: #{tpu_custom_call.1} parent=31 // pred_fallthru
          _
        // Predicated region
        $region37: #{tpu_custom_call.1} parent=31 // pred_check
          %p911 = pneg %p131
        $region38: #{tpu_custom_call.1} parent=31 // pred_check_branch
          %913 = sbr.rel (%p911) target = $region40
        $region39: #{tpu_custom_call.1} parent=31 // pred_region
          _
        $region40: #{tpu_custom_call.1} parent=31 // pred_fallthru
          _
      $region32: #{tpu_custom_call.1} parent=5 // pred_fallthru
        _
      %p914 = scmp.le.s32.totalorder 2, %s14
      // Predicated region
      $region41: #{tpu_custom_call.1} parent=5 // pred_check
        %p915 = pneg %p914
      $region42: #{tpu_custom_call.1} parent=5 // pred_check_branch
        %917 = sbr.rel (%p915) target = $region44
      $region43: #{tpu_custom_call.1} parent=5 // pred_region
        %s918 = ssub.s32 %s14, 2
        // Predicated region
        $region45: #{tpu_custom_call.1} parent=43 // pred_check
          %p919 = pneg %p111
        $region46: #{tpu_custom_call.1} parent=43 // pred_check_branch
          %921 = sbr.rel (%p919) target = $region48
        $region47: #{tpu_custom_call.1} parent=43 // pred_region
          %s922 = sand.u32 %s96, 1
          %s923 = scalar_lea.sflag [#allocation4], %s922
          %s924 = sand.u32 %s96, 1
          %s925 = smul.addr %s924, 12
          %s926 = scalar_lea.vmem [#allocation3], %s925
          %928 = dma.done %s923, 192
        $region48: #{tpu_custom_call.1} parent=43 // pred_fallthru
          _
        // Predicated region
        $region49: #{tpu_custom_call.1} parent=43 // pred_check
          %p929 = pneg %p137
        $region50: #{tpu_custom_call.1} parent=43 // pred_check_branch
          %931 = sbr.rel (%p929) target = $region52
        $region51: #{tpu_custom_call.1} parent=43 // pred_region
          %p932 = scmp.lt.s32.totalorder %s20, 1
          %s933 = scalar_select %p932, %s20, 1
          %s934 = smul.addr %s933, 8
          %s935 = scalar_lea.vmem %s4, %s934
        $region52: #{tpu_custom_call.1} parent=43 // pred_fallthru
          _
      $region44: #{tpu_custom_call.1} parent=5 // pred_fallthru
        _
    $region6: #{tpu_custom_call.1} parent=1 // loop_footer
      %s18 = sadd.s32 1, %s14
    $region7: #{tpu_custom_call.1} parent=1 // loop_footer_branch
      %13 = sbr.rel target = $region3
    $region8: #{tpu_custom_call.1} parent=1 // loop_exit
      _
    %936 = vsyncpa [#allocation4], 1
    %s937 = scalar_lea.sflag [#allocation4], 1
    %938 = vsyncpa %s937, 1

</llo_original>
